<compile_context>
chip_gen: v5e
topology: v5e:2x2
jax: 0.10.0
libtpu: 0.0.40
codegen_flags: <defaults>
</compile_context>

<pallas_src>
import jax
import jax.numpy as jnp
from jax.experimental import pallas as pl
from jax.experimental.pallas import tpu as pltpu


def _leaky_relu(v, negative_slope=0.01):
    # For 0 < slope < 1 this equals torch.nn.functional.leaky_relu.
    return jnp.maximum(v, negative_slope * v)


def critic_kernel(
    x_ref,                        # [TILE_B, state_dim]   (weight dtype)
    u_ref,                        # [TILE_B, action_dim]  (weight dtype)
    w1s_ref, w1a_ref, b1_ref,     # [S, 512], [A, 512], [1, 512]
    w2_ref, b2_ref,               # [512, 128], [1, 128]
    w3_ref, b3_ref,               # [128, 32],  [1, 32]
    w4_ref,                       # [1, 32]   (l4 weight as a row)
    b4_ref,                       # [1, 1]    scalar bias in SMEM
    out_ref,                      # [TILE_B, 1]
):
    cdt = w1s_ref.dtype           # MXU operand dtype (f32 or bf16); acc is f32

    # folded l0_state/l0_actor/concat/l1 (split weights) -> leaky_relu
    h = (jnp.dot(x_ref[...], w1s_ref[...], preferred_element_type=jnp.float32)
         + jnp.dot(u_ref[...], w1a_ref[...], preferred_element_type=jnp.float32)
         + b1_ref[...])
    h = _leaky_relu(h)                                           # [B, 512] f32

    # l2 -> leaky_relu
    h = jnp.dot(h.astype(cdt), w2_ref[...],
                preferred_element_type=jnp.float32) + b2_ref[...]
    h = _leaky_relu(h)                                           # [B, 128] f32

    # l3 -> leaky_relu
    h = jnp.dot(h.astype(cdt), w3_ref[...],
                preferred_element_type=jnp.float32) + b3_ref[...]
    h = _leaky_relu(h)                                           # [B, 32]  f32

    # l4 (N=1): lane reduction on the VPU/XLU instead of an MXU push.
    w4_row = w4_ref[...].astype(jnp.float32)                     # [1, 32]
    out = jnp.sum(h * w4_row, axis=-1, keepdims=True) + b4_ref[0, 0]
    out_ref[...] = out.astype(out_ref.dtype)                     # [B, 1]


def init_critic_params(key, state_dim, action_dim):
    """Deterministic init matching the module's shapes.

    Weights: xavier_normal_ (as in Critic.__init__).
    Biases:  PyTorch nn.Linear default uniform(-1/sqrt(fan_in), 1/sqrt(fan_in)).
    Weights are returned already transposed to [in, out]; biases as [1, out].
    """
    dims = [
        ("l0_state", state_dim, 32),
        ("l0_actor", action_dim, 32),
        ("l1", 64, 512),
        ("l2", 512, 128),
        ("l3", 128, 32),
        ("l4", 32, 1),
    ]
    params = {}
    for name, fan_in, fan_out in dims:
        key, kw, kb = jax.random.split(key, 3)
        std = jnp.sqrt(2.0 / (fan_in + fan_out))        # xavier normal gain=1
        w = std * jax.random.normal(kw, (fan_in, fan_out), dtype=jnp.float32)
        bound = 1.0 / jnp.sqrt(float(fan_in))
        b = jax.random.uniform(
            kb, (1, fan_out), minval=-bound, maxval=bound, dtype=jnp.float32
        )
        params[name] = (w, b)
    return params


def fold_critic_params(params, weight_dtype=jnp.bfloat16):
    """One-time algebraic fold of l0_state/l0_actor + concat + l1.

    There is no nonlinearity between l0 and l1, so:
        W1_state' = W0s @ W1[:32]   [S, 512]
        W1_action'= W0a @ W1[32:]   [A, 512]
        b1'       = b0s @ W1[:32] + b0a @ W1[32:] + b1
    Weights optionally cast to bf16 (MXU-native on every TPU generation);
    biases stay f32.
    """
    w0s, b0s = params["l0_state"]          # [S, 32], [1, 32]
    w0a, b0a = params["l0_actor"]          # [A, 32], [1, 32]
    w1, b1 = params["l1"]                  # [64, 512], [1, 512]
    w1_s, w1_a = w1[:32, :], w1[32:, :]

    w1s_f = w0s @ w1_s                     # [S, 512]
    w1a_f = w0a @ w1_a                     # [A, 512]
    b1_f = b0s @ w1_s + b0a @ w1_a + b1    # [1, 512]

    w2, b2 = params["l2"]
    w3, b3 = params["l3"]
    w4, b4 = params["l4"]

    return {
        "w1s": w1s_f.astype(weight_dtype),
        "w1a": w1a_f.astype(weight_dtype),
        "b1": b1_f.astype(jnp.float32),
        "w2": w2.astype(weight_dtype),  "b2": b2.astype(jnp.float32),
        "w3": w3.astype(weight_dtype),  "b3": b3.astype(jnp.float32),
        "w4": w4.T.astype(weight_dtype),             # [1, 32]
        "b4": b4.reshape(1, 1).astype(jnp.float32),  # scalar, goes to SMEM
    }


def _round_up(x, m):
    return ((x + m - 1) // m) * m


def _choose_tile(batch, tile_b):
    """Batch tile: full dim for tiny B, else >=2 grid steps, multiple of 8."""
    if batch <= 8:
        return batch                       # full-dim block (grid=(1,))
    tb = _round_up(pl.cdiv(batch, 2), 8)   # at least 2 steps -> both v7x TCs
    return min(tile_b, tb)


def critic_forward(x, u, folded, *, tile_b=1024):
    """Batch-gridded Pallas forward. `folded` comes from fold_critic_params."""
    B, S = x.shape
    A = u.shape[1]
    cdt = folded["w1s"].dtype

    # Feed inputs in the MXU operand dtype (halves input DMA in the bf16 path,
    # removes in-kernel converts). No-op for the f32 path.
    x = x.astype(cdt)
    u = u.astype(cdt)

    tb = _choose_tile(B, tile_b)
    grid = (pl.cdiv(B, tb),)

    def resident(shape):
        # Weights/biases: full array, constant block index -> VMEM-resident.
        return pl.BlockSpec(shape, lambda i: (0, 0))

    in_specs = [
        pl.BlockSpec((tb, S), lambda i: (i, 0)),                 # x (pipelined)
        pl.BlockSpec((tb, A), lambda i: (i, 0)),                 # u (pipelined)
        resident(folded["w1s"].shape), resident(folded["w1a"].shape),
        resident(folded["b1"].shape),
        resident(folded["w2"].shape), resident(folded["b2"].shape),
        resident(folded["w3"].shape), resident(folded["b3"].shape),
        resident(folded["w4"].shape),
        pl.BlockSpec(memory_space=pltpu.MemorySpace.SMEM),       # b4 scalar
    ]
    out_spec = pl.BlockSpec((tb, 1), lambda i: (i, 0))

    return pl.pallas_call(
        critic_kernel,
        out_shape=jax.ShapeDtypeStruct((B, 1), jnp.float32),
        grid=grid,
        in_specs=in_specs,
        out_specs=out_spec,
        compiler_params=pltpu.CompilerParams(
            dimension_semantics=("parallel",)),   # 2-TC batch split on v7x
    )(x, u,
      folded["w1s"], folded["w1a"], folded["b1"],
      folded["w2"], folded["b2"],
      folded["w3"], folded["b3"],
      folded["w4"], folded["b4"])


def critic_forward_ref(x, u, params):
    """Pure-JAX reference matching the PyTorch forward (unfolded, f32)."""
    (w0s, b0s) = params["l0_state"]
    (w0a, b0a) = params["l0_actor"]
    xs = x @ w0s + b0s
    xa = u @ w0a + b0a
    h = jnp.concatenate([xs, xa], axis=1)
    for name in ("l1", "l2", "l3"):
        w, b = params[name]
        h = jax.nn.leaky_relu(h @ w + b, negative_slope=0.01)
    w4, b4 = params["l4"]
    return h @ w4 + b4


def critic_forward_folded_ref(x, u, folded):
    """Pure-JAX reference with the same folded params / compute dtypes as the kernel."""
    cdt = folded["w1s"].dtype
    xc = x.astype(cdt)
    uc = u.astype(cdt)
    h = (jnp.dot(xc, folded["w1s"], preferred_element_type=jnp.float32)
         + jnp.dot(uc, folded["w1a"], preferred_element_type=jnp.float32)
         + folded["b1"])
    h = jax.nn.leaky_relu(h, negative_slope=0.01)
    h = jnp.dot(h.astype(cdt), folded["w2"],
                preferred_element_type=jnp.float32) + folded["b2"]
    h = jax.nn.leaky_relu(h, negative_slope=0.01)
    h = jnp.dot(h.astype(cdt), folded["w3"],
                preferred_element_type=jnp.float32) + folded["b3"]
    h = jax.nn.leaky_relu(h, negative_slope=0.01)
    return (jnp.sum(h * folded["w4"].astype(jnp.float32), axis=-1, keepdims=True)
            + folded["b4"][0, 0])


if __name__ == "__main__":
    state_dim, action_dim = 16, 4

    key = jax.random.PRNGKey(0)
    k_params, k_x, k_u = jax.random.split(key, 3)

    params = init_critic_params(k_params, state_dim, action_dim)
    folded_f32 = fold_critic_params(params, jnp.float32)
    folded_bf16 = fold_critic_params(params, jnp.bfloat16)   # recommended default

    # --- Small batch (grid=(1,)) -------------------------------------------
    batch = 8
    x = jax.random.normal(k_x, (batch, state_dim), dtype=jnp.float32)
    u = jax.random.normal(k_u, (batch, action_dim), dtype=jnp.float32)

    ref = critic_forward_ref(x, u, params)

    out_f32 = jax.block_until_ready(critic_forward(x, u, folded_f32))
    assert out_f32.shape == (batch, 1)
    assert jnp.allclose(out_f32, ref, atol=1e-4, rtol=1e-4), \
        "f32 mismatch vs reference (small batch)"

    out_bf16 = jax.block_until_ready(critic_forward(x, u, folded_bf16))
    ref_bf16 = critic_forward_folded_ref(x, u, folded_bf16)
    assert out_bf16.shape == (batch, 1)
    assert jnp.allclose(out_bf16, ref_bf16, atol=1e-3, rtol=1e-3), \
        "bf16 mismatch vs matched reference (small batch)"

    # --- Larger batch: exercises >=2 grid steps + partial last tile --------
    batch2 = 200
    k_x2, k_u2 = jax.random.split(jax.random.PRNGKey(1))
    x2 = jax.random.normal(k_x2, (batch2, state_dim), dtype=jnp.float32)
    u2 = jax.random.normal(k_u2, (batch2, action_dim), dtype=jnp.float32)

    ref2 = critic_forward_ref(x2, u2, params)
    out2_f32 = jax.block_until_ready(critic_forward(x2, u2, folded_f32))
    assert out2_f32.shape == (batch2, 1)
    assert jnp.allclose(out2_f32, ref2, atol=2e-4, rtol=2e-4), \
        "f32 mismatch vs reference (tiled batch)"

    out2_bf16 = jax.block_until_ready(critic_forward(x2, u2, folded_bf16))
    ref2_bf16 = critic_forward_folded_ref(x2, u2, folded_bf16)
    assert jnp.allclose(out2_bf16, ref2_bf16, atol=1e-3, rtol=1e-3), \
        "bf16 mismatch vs matched reference (tiled batch)"

    print("KERNEL_OK")
</pallas_src>

<mosaic_0001>
module attributes {stable_mosaic.version = 11 : i64} {
  func.func @critic_kernel(%arg0: i32, %arg1: memref<8x16xf32, #tpu.memory_space<vmem>>, %arg2: memref<8x4xf32, #tpu.memory_space<vmem>>, %arg3: memref<16x512xf32, #tpu.memory_space<vmem>>, %arg4: memref<4x512xf32, #tpu.memory_space<vmem>>, %arg5: memref<1x512xf32, #tpu.memory_space<vmem>>, %arg6: memref<512x128xf32, #tpu.memory_space<vmem>>, %arg7: memref<1x128xf32, #tpu.memory_space<vmem>>, %arg8: memref<128x32xf32, #tpu.memory_space<vmem>>, %arg9: memref<1x32xf32, #tpu.memory_space<vmem>>, %arg10: memref<1x32xf32, #tpu.memory_space<vmem>>, %arg11: memref<1x1xf32, #tpu.memory_space<smem>>, %arg12: memref<8x1xf32, #tpu.memory_space<vmem>>) attributes {dimension_semantics = [#tpu.dimension_semantics<parallel>], iteration_bounds = array<i64: 1>, scalar_prefetch = 0 : i64, scratch_operands = 0 : i64, tpu.core_type = #tpu.core_type<tc>, window_params = [{transform_indices = @transform_0, window_bounds = array<i64: 8, 16>}, {transform_indices = @transform_1, window_bounds = array<i64: 8, 4>}, {pipeline_mode = #tpu.pipeline_mode<synchronous>, transform_indices = @transform_2, window_bounds = array<i64: 16, 512>}, {pipeline_mode = #tpu.pipeline_mode<synchronous>, transform_indices = @transform_3, window_bounds = array<i64: 4, 512>}, {pipeline_mode = #tpu.pipeline_mode<synchronous>, transform_indices = @transform_4, window_bounds = array<i64: 1, 512>}, {pipeline_mode = #tpu.pipeline_mode<synchronous>, transform_indices = @transform_5, window_bounds = array<i64: 512, 128>}, {pipeline_mode = #tpu.pipeline_mode<synchronous>, transform_indices = @transform_6, window_bounds = array<i64: 1, 128>}, {pipeline_mode = #tpu.pipeline_mode<synchronous>, transform_indices = @transform_7, window_bounds = array<i64: 128, 32>}, {pipeline_mode = #tpu.pipeline_mode<synchronous>, transform_indices = @transform_8, window_bounds = array<i64: 1, 32>}, {pipeline_mode = #tpu.pipeline_mode<synchronous>, transform_indices = @transform_9, window_bounds = array<i64: 1, 32>}, {transform_indices = @transform_10, window_bounds = array<i64: 1, 1>}, {transform_indices = @transform_11, window_bounds = array<i64: 8, 1>}]} {
    %c0 = arith.constant 0 : index
    %c0_0 = arith.constant 0 : index
    %0 = vector.load %arg1[%c0, %c0_0] : memref<8x16xf32, #tpu.memory_space<vmem>>, vector<8x16xf32>
    %c0_1 = arith.constant 0 : index
    %c0_2 = arith.constant 0 : index
    %1 = vector.load %arg3[%c0_1, %c0_2] : memref<16x512xf32, #tpu.memory_space<vmem>>, vector<16x512xf32>
    %cst = arith.constant dense<0.000000e+00> : vector<8x512xf32>
    %2 = tpu.matmul %0, %1, %cst {dimension_numbers = #tpu.dot_dimension_numbers<[1], [0], [0], [1], [0, 0, 1, 1], [], []>} : vector<8x16xf32>, vector<16x512xf32>, vector<8x512xf32> -> vector<8x512xf32>
    %c0_3 = arith.constant 0 : index
    %c0_4 = arith.constant 0 : index
    %3 = vector.load %arg2[%c0_3, %c0_4] : memref<8x4xf32, #tpu.memory_space<vmem>>, vector<8x4xf32>
    %c0_5 = arith.constant 0 : index
    %c0_6 = arith.constant 0 : index
    %4 = vector.load %arg4[%c0_5, %c0_6] : memref<4x512xf32, #tpu.memory_space<vmem>>, vector<4x512xf32>
    %cst_7 = arith.constant dense<0.000000e+00> : vector<8x512xf32>
    %5 = tpu.matmul %3, %4, %cst_7 {dimension_numbers = #tpu.dot_dimension_numbers<[1], [0], [0], [1], [0, 0, 1, 1], [], []>} : vector<8x4xf32>, vector<4x512xf32>, vector<8x512xf32> -> vector<8x512xf32>
    %6 = arith.addf %2, %5 : vector<8x512xf32>
    %c0_8 = arith.constant 0 : index
    %c0_9 = arith.constant 0 : index
    %7 = vector.load %arg5[%c0_8, %c0_9] : memref<1x512xf32, #tpu.memory_space<vmem>>, vector<1x512xf32>
    %8 = vector.broadcast %7 : vector<1x512xf32> to vector<8x512xf32>
    %9 = arith.addf %6, %8 : vector<8x512xf32>
    %cst_10 = arith.constant 0.00999999977 : f32
    %10 = vector.broadcast %cst_10 : f32 to vector<8x512xf32>
    %11 = arith.mulf %10, %9 : vector<8x512xf32>
    %12 = arith.maximumf %9, %11 : vector<8x512xf32>
    %c0_11 = arith.constant 0 : index
    %c0_12 = arith.constant 0 : index
    %13 = vector.load %arg6[%c0_11, %c0_12] : memref<512x128xf32, #tpu.memory_space<vmem>>, vector<512x128xf32>
    %cst_13 = arith.constant dense<0.000000e+00> : vector<8x128xf32>
    %14 = tpu.matmul %12, %13, %cst_13 {dimension_numbers = #tpu.dot_dimension_numbers<[1], [0], [0], [1], [0, 0, 1, 1], [], []>} : vector<8x512xf32>, vector<512x128xf32>, vector<8x128xf32> -> vector<8x128xf32>
    %c0_14 = arith.constant 0 : index
    %c0_15 = arith.constant 0 : index
    %15 = vector.load %arg7[%c0_14, %c0_15] : memref<1x128xf32, #tpu.memory_space<vmem>>, vector<1x128xf32>
    %16 = vector.broadcast %15 : vector<1x128xf32> to vector<8x128xf32>
    %17 = arith.addf %14, %16 : vector<8x128xf32>
    %cst_16 = arith.constant 0.00999999977 : f32
    %18 = vector.broadcast %cst_16 : f32 to vector<8x128xf32>
    %19 = arith.mulf %18, %17 : vector<8x128xf32>
    %20 = arith.maximumf %17, %19 : vector<8x128xf32>
    %c0_17 = arith.constant 0 : index
    %c0_18 = arith.constant 0 : index
    %21 = vector.load %arg8[%c0_17, %c0_18] : memref<128x32xf32, #tpu.memory_space<vmem>>, vector<128x32xf32>
    %cst_19 = arith.constant dense<0.000000e+00> : vector<8x32xf32>
    %22 = tpu.matmul %20, %21, %cst_19 {dimension_numbers = #tpu.dot_dimension_numbers<[1], [0], [0], [1], [0, 0, 1, 1], [], []>} : vector<8x128xf32>, vector<128x32xf32>, vector<8x32xf32> -> vector<8x32xf32>
    %c0_20 = arith.constant 0 : index
    %c0_21 = arith.constant 0 : index
    %23 = vector.load %arg9[%c0_20, %c0_21] : memref<1x32xf32, #tpu.memory_space<vmem>>, vector<1x32xf32>
    %24 = vector.broadcast %23 : vector<1x32xf32> to vector<8x32xf32>
    %25 = arith.addf %22, %24 : vector<8x32xf32>
    %cst_22 = arith.constant 0.00999999977 : f32
    %26 = vector.broadcast %cst_22 : f32 to vector<8x32xf32>
    %27 = arith.mulf %26, %25 : vector<8x32xf32>
    %28 = arith.maximumf %25, %27 : vector<8x32xf32>
    %c0_23 = arith.constant 0 : index
    %c0_24 = arith.constant 0 : index
    %29 = vector.load %arg10[%c0_23, %c0_24] : memref<1x32xf32, #tpu.memory_space<vmem>>, vector<1x32xf32>
    %30 = vector.broadcast %29 : vector<1x32xf32> to vector<8x32xf32>
    %31 = arith.mulf %28, %30 : vector<8x32xf32>
    %cst_25 = arith.constant dense<0.000000e+00> : vector<8xf32>
    %32 = vector.multi_reduction <add>, %31, %cst_25 [1] : vector<8x32xf32> to vector<8xf32>
    %33 = vector.shape_cast %32 : vector<8xf32> to vector<8x1xf32>
    %c0_26 = arith.constant 0 : index
    %c0_27 = arith.constant 0 : index
    %34 = memref.load %arg11[%c0_26, %c0_27] : memref<1x1xf32, #tpu.memory_space<smem>>
    %35 = vector.broadcast %34 : f32 to vector<8x1xf32>
    %36 = arith.addf %33, %35 : vector<8x1xf32>
    %c0_28 = arith.constant 0 : index
    %c0_29 = arith.constant 0 : index
    %37 = vector.load %arg12[%c0_28, %c0_29] : memref<8x1xf32, #tpu.memory_space<vmem>>, vector<8x1xf32>
    tpu.vector_store %arg12[%c0_28, %c0_29], %36 {strides = array<i32>} : memref<8x1xf32, #tpu.memory_space<vmem>>, vector<8x1xf32>,
    return
  }
  func.func @transform_0(%arg0: i32) -> (i32, i32) {
    %c0_i32 = arith.constant 0 : i32
    %c0_i32_0 = arith.constant 0 : i32
    return %arg0, %c0_i32 : i32, i32
  }
  func.func @transform_1(%arg0: i32) -> (i32, i32) {
    %c0_i32 = arith.constant 0 : i32
    %c0_i32_0 = arith.constant 0 : i32
    return %arg0, %c0_i32 : i32, i32
  }
  func.func @transform_2(%arg0: i32) -> (i32, i32) {
    %c0_i32 = arith.constant 0 : i32
    %c0_i32_0 = arith.constant 0 : i32
    %c0_i32_1 = arith.constant 0 : i32
    return %c0_i32, %c0_i32_0 : i32, i32
  }
  func.func @transform_3(%arg0: i32) -> (i32, i32) {
    %c0_i32 = arith.constant 0 : i32
    %c0_i32_0 = arith.constant 0 : i32
    %c0_i32_1 = arith.constant 0 : i32
    return %c0_i32, %c0_i32_0 : i32, i32
  }
  func.func @transform_4(%arg0: i32) -> (i32, i32) {
    %c0_i32 = arith.constant 0 : i32
    %c0_i32_0 = arith.constant 0 : i32
    %c0_i32_1 = arith.constant 0 : i32
    return %c0_i32, %c0_i32_0 : i32, i32
  }
  func.func @transform_5(%arg0: i32) -> (i32, i32) {
    %c0_i32 = arith.constant 0 : i32
    %c0_i32_0 = arith.constant 0 : i32
    %c0_i32_1 = arith.constant 0 : i32
    return %c0_i32, %c0_i32_0 : i32, i32
  }
  func.func @transform_6(%arg0: i32) -> (i32, i32) {
    %c0_i32 = arith.constant 0 : i32
    %c0_i32_0 = arith.constant 0 : i32
    %c0_i32_1 = arith.constant 0 : i32
    return %c0_i32, %c0_i32_0 : i32, i32
  }
  func.func @transform_7(%arg0: i32) -> (i32, i32) {
    %c0_i32 = arith.constant 0 : i32
    %c0_i32_0 = arith.constant 0 : i32
    %c0_i32_1 = arith.constant 0 : i32
    return %c0_i32, %c0_i32_0 : i32, i32
  }
  func.func @transform_8(%arg0: i32) -> (i32, i32) {
    %c0_i32 = arith.constant 0 : i32
    %c0_i32_0 = arith.constant 0 : i32
    %c0_i32_1 = arith.constant 0 : i32
    return %c0_i32, %c0_i32_0 : i32, i32
  }
  func.func @transform_9(%arg0: i32) -> (i32, i32) {
    %c0_i32 = arith.constant 0 : i32
    %c0_i32_0 = arith.constant 0 : i32
    %c0_i32_1 = arith.constant 0 : i32
    return %c0_i32, %c0_i32_0 : i32, i32
  }
  func.func @transform_10(%arg0: i32) -> (i32, i32) {
    %c0_i32 = arith.constant 0 : i32
    %c0_i32_0 = arith.constant 0 : i32
    %c0_i32_1 = arith.constant 0 : i32
    return %c0_i32, %c0_i32_0 : i32, i32
  }
  func.func @transform_11(%arg0: i32) -> (i32, i32) {
    %c0_i32 = arith.constant 0 : i32
    %c0_i32_0 = arith.constant 0 : i32
    return %arg0, %c0_i32 : i32, i32
  }
}

</mosaic_0001>

<llo_original>
// kernel: tpu_custom_call.1
$region0: #{tpu_custom_call.1}
  #allocation0 [shape = 'u32[]', space=smem, size = 0x4, offset = 0x4, fixed_abs, tag = 'smem constant byte address 0x4 - core index']
  #allocation1 [shape = 'u32[72,128]{1,0:T(1,128)}', space=vmem, size = 0x9000, scoped, tag = 'internal scratch']
  #allocation2 [shape = 'f32[1,1]{1,0:T(1,128)S(6)}', space=smem, size = 0x200, scoped, tag = 'scoped memory for tpu_custom_call.1']
  %s0 = inlined_call_operand.vmem [shape: f32[8,16], index: 0, kind: input, shape index: {}]
  %s1 = inlined_call_operand.vmem [shape: f32[8,4], index: 1, kind: input, shape index: {}]
  %s2 = inlined_call_operand.vmem [shape: f32[16,512], index: 2, kind: input, shape index: {}]
  %s3 = inlined_call_operand.vmem [shape: f32[4,512], index: 3, kind: input, shape index: {}]
  %s4 = inlined_call_operand.vmem [shape: f32[1,512], index: 4, kind: input, shape index: {}]
  %s5 = inlined_call_operand.hbm [shape: f32[512,128], index: 5, kind: input, shape index: {}]
  %s6 = inlined_call_operand.vmem [shape: f32[1,128], index: 6, kind: input, shape index: {}]
  %s7 = inlined_call_operand.vmem [shape: f32[128,32], index: 7, kind: input, shape index: {}]
  %s8 = inlined_call_operand.vmem [shape: f32[1,32], index: 8, kind: input, shape index: {}]
  %s9 = inlined_call_operand.vmem [shape: f32[1,32], index: 9, kind: input, shape index: {}]
  %s10 = inlined_call_operand.<no memory space> [shape: f32[1,1], index: 10, kind: input, shape index: {}]
  %s11 = inlined_call_operand.vmem [shape: f32[8,1], index: 11, kind: output, shape index: {}]
  %s12 = sld [smem:[#allocation0]]
  $region58: #{tpu_custom_call.1} parent=0
    _
  %s14 = ssub.s32 1, %s12
  %s15 = scalar_select 0, %s14, %s12
  %16 = sst [smem:[#allocation2]] %s10
  $region1: #{tpu_custom_call.1} parent=0
    #allocation3 [shape = 'u8[262144]{0}', space=vmem, size = 0x40000, scoped, tag = 'input window, operand 5, single buffered']
    #allocation4 [shape = 's32[1]{0}', space=sflag, size = 0x4, scoped, tag = 'scoped memory for tpu_custom_call.1']
    %17 = vsyncpa [#allocation4], 0
    // Predicated region
    $region2: #{tpu_custom_call.1} parent=1 // pred_check
      _
    $region3: #{tpu_custom_call.1} parent=1 // pred_check_branch
      %19 = sbr.rel (0) target = $region5
    $region4: #{tpu_custom_call.1} parent=1 // pred_region
      _
    $region5: #{tpu_custom_call.1} parent=1 // pred_fallthru
      _
    // Predicated region
    $region6: #{tpu_custom_call.1} parent=1 // pred_check
      _
    $region7: #{tpu_custom_call.1} parent=1 // pred_check_branch
      %21 = sbr.rel (0) target = $region9
    $region8: #{tpu_custom_call.1} parent=1 // pred_region
      _
    $region9: #{tpu_custom_call.1} parent=1 // pred_fallthru
      _
    // Predicated region
    $region10: #{tpu_custom_call.1} parent=1 // pred_check
      _
    $region11: #{tpu_custom_call.1} parent=1 // pred_check_branch
      %23 = sbr.rel (0) target = $region13
    $region12: #{tpu_custom_call.1} parent=1 // pred_region
      _
    $region13: #{tpu_custom_call.1} parent=1 // pred_fallthru
      _
    // Predicated region
    $region14: #{tpu_custom_call.1} parent=1 // pred_check
      _
    $region15: #{tpu_custom_call.1} parent=1 // pred_check_branch
      %25 = sbr.rel (0) target = $region17
    $region16: #{tpu_custom_call.1} parent=1 // pred_region
      _
    $region17: #{tpu_custom_call.1} parent=1 // pred_fallthru
      _
    // Predicated region
    $region18: #{tpu_custom_call.1} parent=1 // pred_check
      _
    $region19: #{tpu_custom_call.1} parent=1 // pred_check_branch
      %27 = sbr.rel (0) target = $region21
    $region20: #{tpu_custom_call.1} parent=1 // pred_region
      _
    $region21: #{tpu_custom_call.1} parent=1 // pred_fallthru
      _
    // Predicated region
    $region22: #{tpu_custom_call.1} parent=1 // pred_check
      _
    $region23: #{tpu_custom_call.1} parent=1 // pred_check_branch
      %29 = sbr.rel (0) target = $region25
    $region24: #{tpu_custom_call.1} parent=1 // pred_region
      %31 = vsyncadd [#allocation4], 0
      %s32 = sshll.u32 %s5, 4
      %s33 = int_to_ptr.hbm [resolvable:$true] %s32
      %s34 = sshll.u32 [#allocation3], 4
      %s35 = int_to_ptr.vmem [resolvable:$true] %s34
      %40 = dma.hbm_to_vmem [thread:$0]  %s33, 8192, %s35, [#allocation4], 128, 128, 8
    $region25: #{tpu_custom_call.1} parent=1 // pred_fallthru
      _
    // Predicated region
    $region26: #{tpu_custom_call.1} parent=1 // pred_check
      _
    $region27: #{tpu_custom_call.1} parent=1 // pred_check_branch
      %42 = sbr.rel (0) target = $region29
    $region28: #{tpu_custom_call.1} parent=1 // pred_region
      _
    $region29: #{tpu_custom_call.1} parent=1 // pred_fallthru
      _
    // Predicated region
    $region30: #{tpu_custom_call.1} parent=1 // pred_check
      _
    $region31: #{tpu_custom_call.1} parent=1 // pred_check_branch
      %44 = sbr.rel (0) target = $region33
    $region32: #{tpu_custom_call.1} parent=1 // pred_region
      _
    $region33: #{tpu_custom_call.1} parent=1 // pred_fallthru
      _
    // Predicated region
    $region34: #{tpu_custom_call.1} parent=1 // pred_check
      _
    $region35: #{tpu_custom_call.1} parent=1 // pred_check_branch
      %46 = sbr.rel (0) target = $region37
    $region36: #{tpu_custom_call.1} parent=1 // pred_region
      _
    $region37: #{tpu_custom_call.1} parent=1 // pred_fallthru
      _
    // Predicated region
    $region38: #{tpu_custom_call.1} parent=1 // pred_check
      _
    $region39: #{tpu_custom_call.1} parent=1 // pred_check_branch
      %48 = sbr.rel (0) target = $region41
    $region40: #{tpu_custom_call.1} parent=1 // pred_region
      _
    $region41: #{tpu_custom_call.1} parent=1 // pred_fallthru
      _
    // Predicated region
    $region42: #{tpu_custom_call.1} parent=1 // pred_check
      _
    $region43: #{tpu_custom_call.1} parent=1 // pred_check_branch
      %50 = sbr.rel (0) target = $region45
    $region44: #{tpu_custom_call.1} parent=1 // pred_region
      _
    $region45: #{tpu_custom_call.1} parent=1 // pred_fallthru
      _
    // Predicated region
    $region46: #{tpu_custom_call.1} parent=1 // pred_check
      _
    $region47: #{tpu_custom_call.1} parent=1 // pred_check_branch
      %52 = sbr.rel (0) target = $region49
    $region48: #{tpu_custom_call.1} parent=1 // pred_region
      %54 = dma.done [#allocation4], 8192
    $region49: #{tpu_custom_call.1} parent=1 // pred_fallthru
      _
    %v55 = vld [vmem:[%s0] sm:$0xff]
    %v56 = vld [vmem:[%s2] sm:$0xff]
    %v57 = vld [vmem:[%s2 + $0x8] sm:$0xff]
    %v58 = vld [vmem:[%s2 + $0x10] sm:$0xff]
    %v59 = vld [vmem:[%s2 + $0x18] sm:$0xff]
    %v60 = vld [vmem:[%s2 + $0x20] sm:$0xff]
    %v61 = vld [vmem:[%s2 + $0x28] sm:$0xff]
    %v62 = vld [vmem:[%s2 + $0x30] sm:$0xff]
    %v63 = vld [vmem:[%s2 + $0x38] sm:$0xff]
    %v64 = vld [vmem:[%s1] sm:$0xff]
    %v65 = vld [vmem:[%s3] sm:$0xff]
    %v66 = vld [vmem:[%s3 + $0x8] sm:$0xff]
    %69 = vst [vmem:[#allocation1] ss:$2 sm:$0xff] %v65
    %s70 = scalar_lea.vmem [#allocation1], 16
    %71 = vst [vmem:[%s70] ss:$2 sm:$0xff] %v66
    %v72 = vld.sshfl [vmem:[#allocation1] sm:$0xff pattern:$0x75316420]
    %v73 = vld.sshfl [vmem:[#allocation1 + $0x8] sm:$0xff pattern:$0x75316420]
    %v74 = vld.sshfl [vmem:[#allocation1 + $0x10] sm:$0xff pattern:$0x75316420]
    %v75 = vld.sshfl [vmem:[#allocation1 + $0x18] sm:$0xff pattern:$0x75316420]
    %vm76 = vcmask 31744
    %v78 = vsel %vm76, %v64, 0
    %vm80 = vcmask 1043456
    %v81 = vsel %vm80, %v72, 0
    %v83 = vsel %vm80, %v73, 0
    %v85 = vsel %vm80, %v74, 0
    %v87 = vsel %vm80, %v75, 0
    %89 = vmatpush.msra.mxu0 0.0
    %90 = vmatpush.msra.mxu0 0.0
    %91 = vmatpush.msra.mxu0 0.0
    %92 = vmatpush.msra.mxu0 0.0
    %93 = vmatpush.msra.mxu0 0.0
    %94 = vmatpush.msra.mxu0 0.0
    %95 = vmatpush.msra.mxu0 0.0
    %96 = vmatpush.msra.mxu0 0.0
    %97 = vmatpush.msra.mxu0 0.0
    %98 = vmatpush.msra.mxu0 0.0
    %99 = vmatpush.msra.mxu0 0.0
    %100 = vmatpush.msra.mxu0 0.0
    %101 = vmatpush.msra.mxu0 0.0
    %102 = vmatpush.msra.mxu0 0.0
    %103 = vmatpush.msra.mxu0 0.0
    %104 = vmatpush.msra.mxu0 %v81
    %105 = vmatmul.f32.gmra.mxu0 %v78
    %v106 = vpop.f32.mrf.mxu0
    %v107 = vadd.f32 0.0, %v106
    %108 = vdwg.mxu0
    %109 = vmatpush.msra.mxu0 0.0
    %110 = vmatpush.msra.mxu0 0.0
    %111 = vmatpush.msra.mxu0 0.0
    %112 = vmatpush.msra.mxu0 0.0
    %113 = vmatpush.msra.mxu0 0.0
    %114 = vmatpush.msra.mxu0 0.0
    %115 = vmatpush.msra.mxu0 0.0
    %116 = vmatpush.msra.mxu0 0.0
    %117 = vmatpush.msra.mxu0 0.0
    %118 = vmatpush.msra.mxu0 0.0
    %119 = vmatpush.msra.mxu0 0.0
    %120 = vmatpush.msra.mxu0 0.0
    %121 = vmatpush.msra.mxu0 0.0
    %122 = vmatpush.msra.mxu0 0.0
    %123 = vmatpush.msra.mxu0 0.0
    %124 = vmatpush.msra.mxu0 %v83
    %125 = vmatmul.f32.gmra.mxu0 %v78
    %v126 = vpop.f32.mrf.mxu0
    %v127 = vadd.f32 0.0, %v126
    %128 = vdwg.mxu0
    %129 = vmatpush.msra.mxu0 0.0
    %130 = vmatpush.msra.mxu0 0.0
    %131 = vmatpush.msra.mxu0 0.0
    %132 = vmatpush.msra.mxu0 0.0
    %133 = vmatpush.msra.mxu0 0.0
    %134 = vmatpush.msra.mxu0 0.0
    %135 = vmatpush.msra.mxu0 0.0
    %136 = vmatpush.msra.mxu0 0.0
    %137 = vmatpush.msra.mxu0 0.0
    %138 = vmatpush.msra.mxu0 0.0
    %139 = vmatpush.msra.mxu0 0.0
    %140 = vmatpush.msra.mxu0 0.0
    %141 = vmatpush.msra.mxu0 0.0
    %142 = vmatpush.msra.mxu0 0.0
    %143 = vmatpush.msra.mxu0 0.0
    %144 = vmatpush.msra.mxu0 %v85
    %145 = vmatmul.f32.gmra.mxu0 %v78
    %v146 = vpop.f32.mrf.mxu0
    %v147 = vadd.f32 0.0, %v146
    %148 = vdwg.mxu0
    %149 = vmatpush.msra.mxu0 0.0
    %150 = vmatpush.msra.mxu0 0.0
    %151 = vmatpush.msra.mxu0 0.0
    %152 = vmatpush.msra.mxu0 0.0
    %153 = vmatpush.msra.mxu0 0.0
    %154 = vmatpush.msra.mxu0 0.0
    %155 = vmatpush.msra.mxu0 0.0
    %156 = vmatpush.msra.mxu0 0.0
    %157 = vmatpush.msra.mxu0 0.0
    %158 = vmatpush.msra.mxu0 0.0
    %159 = vmatpush.msra.mxu0 0.0
    %160 = vmatpush.msra.mxu0 0.0
    %161 = vmatpush.msra.mxu0 0.0
    %162 = vmatpush.msra.mxu0 0.0
    %163 = vmatpush.msra.mxu0 0.0
    %164 = vmatpush.msra.mxu0 %v87
    %165 = vmatmul.f32.gmra.mxu0 %v78
    %v166 = vpop.f32.mrf.mxu0
    %v167 = vadd.f32 0.0, %v166
    %168 = vdwg.mxu0
    %vm169 = vcmask 130048
    %v171 = vsel %vm169, %v55, 0
    %173 = vmatpush.msra.mxu0 0.0
    %174 = vmatpush.msra.mxu0 0.0
    %175 = vmatpush.msra.mxu0 0.0
    %176 = vmatpush.msra.mxu0 0.0
    %177 = vmatpush.msra.mxu0 0.0
    %178 = vmatpush.msra.mxu0 0.0
    %179 = vmatpush.msra.mxu0 0.0
    %180 = vmatpush.msra.mxu0 0.0
    %181 = vmatpush.msra.mxu0 0.0
    %182 = vmatpush.msra.mxu0 0.0
    %183 = vmatpush.msra.mxu0 0.0
    %184 = vmatpush.msra.mxu0 0.0
    %185 = vmatpush.msra.mxu0 0.0
    %186 = vmatpush.msra.mxu0 0.0
    %187 = vmatpush.msra.mxu0 %v60
    %188 = vmatpush.msra.mxu0 %v56
    %189 = vmatmul.f32.gmra.mxu0 %v171
    %v190 = vpop.f32.mrf.mxu0
    %v191 = vadd.f32 %v107, %v190
    %192 = vdwg.mxu0
    %193 = vmatpush.msra.mxu0 0.0
    %194 = vmatpush.msra.mxu0 0.0
    %195 = vmatpush.msra.mxu0 0.0
    %196 = vmatpush.msra.mxu0 0.0
    %197 = vmatpush.msra.mxu0 0.0
    %198 = vmatpush.msra.mxu0 0.0
    %199 = vmatpush.msra.mxu0 0.0
    %200 = vmatpush.msra.mxu0 0.0
    %201 = vmatpush.msra.mxu0 0.0
    %202 = vmatpush.msra.mxu0 0.0
    %203 = vmatpush.msra.mxu0 0.0
    %204 = vmatpush.msra.mxu0 0.0
    %205 = vmatpush.msra.mxu0 0.0
    %206 = vmatpush.msra.mxu0 0.0
    %207 = vmatpush.msra.mxu0 %v61
    %208 = vmatpush.msra.mxu0 %v57
    %209 = vmatmul.f32.gmra.mxu0 %v171
    %v210 = vpop.f32.mrf.mxu0
    %v211 = vadd.f32 %v127, %v210
    %212 = vdwg.mxu0
    %213 = vmatpush.msra.mxu0 0.0
    %214 = vmatpush.msra.mxu0 0.0
    %215 = vmatpush.msra.mxu0 0.0
    %216 = vmatpush.msra.mxu0 0.0
    %217 = vmatpush.msra.mxu0 0.0
    %218 = vmatpush.msra.mxu0 0.0
    %219 = vmatpush.msra.mxu0 0.0
    %220 = vmatpush.msra.mxu0 0.0
    %221 = vmatpush.msra.mxu0 0.0
    %222 = vmatpush.msra.mxu0 0.0
    %223 = vmatpush.msra.mxu0 0.0
    %224 = vmatpush.msra.mxu0 0.0
    %225 = vmatpush.msra.mxu0 0.0
    %226 = vmatpush.msra.mxu0 0.0
    %227 = vmatpush.msra.mxu0 %v62
    %228 = vmatpush.msra.mxu0 %v58
    %229 = vmatmul.f32.gmra.mxu0 %v171
    %v230 = vpop.f32.mrf.mxu0
    %v231 = vadd.f32 %v147, %v230
    %232 = vdwg.mxu0
    %233 = vmatpush.msra.mxu0 0.0
    %234 = vmatpush.msra.mxu0 0.0
    %235 = vmatpush.msra.mxu0 0.0
    %236 = vmatpush.msra.mxu0 0.0
    %237 = vmatpush.msra.mxu0 0.0
    %238 = vmatpush.msra.mxu0 0.0
    %239 = vmatpush.msra.mxu0 0.0
    %240 = vmatpush.msra.mxu0 0.0
    %241 = vmatpush.msra.mxu0 0.0
    %242 = vmatpush.msra.mxu0 0.0
    %243 = vmatpush.msra.mxu0 0.0
    %244 = vmatpush.msra.mxu0 0.0
    %245 = vmatpush.msra.mxu0 0.0
    %246 = vmatpush.msra.mxu0 0.0
    %247 = vmatpush.msra.mxu0 %v63
    %248 = vmatpush.msra.mxu0 %v59
    %249 = vmatmul.f32.gmra.mxu0 %v171
    %v250 = vpop.f32.mrf.mxu0
    %v251 = vadd.f32 %v167, %v250
    %252 = vdwg.mxu0
    %v253 = vld [vmem:[%s4] sm:$0xf]
    %v255 = vperm.slane %v253, 0
    %v256 = vperm.slane %v253, 1
    %v257 = vperm.slane %v253, 2
    %v258 = vperm.slane %v253, 3
    %v263 = vadd.f32 %v191, %v255
    %v264 = vadd.f32 %v211, %v256
    %v265 = vadd.f32 %v231, %v257
    %v266 = vadd.f32 %v251, %v258
    %v267 = vmul.f32 %v263, 0.01
    %v268 = vmul.f32 %v264, 0.01
    %v269 = vmul.f32 %v265, 0.01
    %v270 = vmul.f32 %v266, 0.01
    %v271 = vmax.f32 %v263, %v267
    %v272 = vmax.f32 %v264, %v268
    %v273 = vmax.f32 %v265, %v269
    %v274 = vmax.f32 %v266, %v270
    %v275 = vld [vmem:[#allocation3] sm:$0xff]
    %v276 = vld [vmem:[#allocation3 + $0x8] sm:$0xff]
    %v277 = vld [vmem:[#allocation3 + $0x10] sm:$0xff]
    %v278 = vld [vmem:[#allocation3 + $0x18] sm:$0xff]
    %v279 = vld [vmem:[#allocation3 + $0x20] sm:$0xff]
    %v280 = vld [vmem:[#allocation3 + $0x28] sm:$0xff]
    %v281 = vld [vmem:[#allocation3 + $0x30] sm:$0xff]
    %v282 = vld [vmem:[#allocation3 + $0x38] sm:$0xff]
    %v283 = vld [vmem:[#allocation3 + $0x40] sm:$0xff]
    %v284 = vld [vmem:[#allocation3 + $0x48] sm:$0xff]
    %v285 = vld [vmem:[#allocation3 + $0x50] sm:$0xff]
    %v286 = vld [vmem:[#allocation3 + $0x58] sm:$0xff]
    %v287 = vld [vmem:[#allocation3 + $0x60] sm:$0xff]
    %v288 = vld [vmem:[#allocation3 + $0x68] sm:$0xff]
    %v289 = vld [vmem:[#allocation3 + $0x70] sm:$0xff]
    %v290 = vld [vmem:[#allocation3 + $0x78] sm:$0xff]
    %v291 = vld [vmem:[#allocation3 + $0x80] sm:$0xff]
    %v292 = vld [vmem:[#allocation3 + $0x88] sm:$0xff]
    %v293 = vld [vmem:[#allocation3 + $0x90] sm:$0xff]
    %v294 = vld [vmem:[#allocation3 + $0x98] sm:$0xff]
    %v295 = vld [vmem:[#allocation3 + $0xa0] sm:$0xff]
    %v296 = vld [vmem:[#allocation3 + $0xa8] sm:$0xff]
    %v297 = vld [vmem:[#allocation3 + $0xb0] sm:$0xff]
    %v298 = vld [vmem:[#allocation3 + $0xb8] sm:$0xff]
    %v299 = vld [vmem:[#allocation3 + $0xc0] sm:$0xff]
    %v300 = vld [vmem:[#allocation3 + $0xc8] sm:$0xff]
    %v301 = vld [vmem:[#allocation3 + $0xd0] sm:$0xff]
    %v302 = vld [vmem:[#allocation3 + $0xd8] sm:$0xff]
    %v303 = vld [vmem:[#allocation3 + $0xe0] sm:$0xff]
    %v304 = vld [vmem:[#allocation3 + $0xe8] sm:$0xff]
    %v305 = vld [vmem:[#allocation3 + $0xf0] sm:$0xff]
    %v306 = vld [vmem:[#allocation3 + $0xf8] sm:$0xff]
    %v307 = vld [vmem:[#allocation3 + $0x100] sm:$0xff]
    %v308 = vld [vmem:[#allocation3 + $0x108] sm:$0xff]
    %v309 = vld [vmem:[#allocation3 + $0x110] sm:$0xff]
    %v310 = vld [vmem:[#allocation3 + $0x118] sm:$0xff]
    %v311 = vld [vmem:[#allocation3 + $0x120] sm:$0xff]
    %v312 = vld [vmem:[#allocation3 + $0x128] sm:$0xff]
    %v313 = vld [vmem:[#allocation3 + $0x130] sm:$0xff]
    %v314 = vld [vmem:[#allocation3 + $0x138] sm:$0xff]
    %v315 = vld [vmem:[#allocation3 + $0x140] sm:$0xff]
    %v316 = vld [vmem:[#allocation3 + $0x148] sm:$0xff]
    %v317 = vld [vmem:[#allocation3 + $0x150] sm:$0xff]
    %v318 = vld [vmem:[#allocation3 + $0x158] sm:$0xff]
    %v319 = vld [vmem:[#allocation3 + $0x160] sm:$0xff]
    %v320 = vld [vmem:[#allocation3 + $0x168] sm:$0xff]
    %v321 = vld [vmem:[#allocation3 + $0x170] sm:$0xff]
    %v322 = vld [vmem:[#allocation3 + $0x178] sm:$0xff]
    %v323 = vld [vmem:[#allocation3 + $0x180] sm:$0xff]
    %v324 = vld [vmem:[#allocation3 + $0x188] sm:$0xff]
    %v325 = vld [vmem:[#allocation3 + $0x190] sm:$0xff]
    %v326 = vld [vmem:[#allocation3 + $0x198] sm:$0xff]
    %v327 = vld [vmem:[#allocation3 + $0x1a0] sm:$0xff]
    %v328 = vld [vmem:[#allocation3 + $0x1a8] sm:$0xff]
    %v329 = vld [vmem:[#allocation3 + $0x1b0] sm:$0xff]
    %v330 = vld [vmem:[#allocation3 + $0x1b8] sm:$0xff]
    %v331 = vld [vmem:[#allocation3 + $0x1c0] sm:$0xff]
    %v332 = vld [vmem:[#allocation3 + $0x1c8] sm:$0xff]
    %v333 = vld [vmem:[#allocation3 + $0x1d0] sm:$0xff]
    %v334 = vld [vmem:[#allocation3 + $0x1d8] sm:$0xff]
    %v335 = vld [vmem:[#allocation3 + $0x1e0] sm:$0xff]
    %v336 = vld [vmem:[#allocation3 + $0x1e8] sm:$0xff]
    %v337 = vld [vmem:[#allocation3 + $0x1f0] sm:$0xff]
    %v338 = vld [vmem:[#allocation3 + $0x1f8] sm:$0xff]
    %v339 = vld [vmem:[%s6] sm:$0x1]
    %v341 = vperm.slane %v339, 0
    %343 = vmatpush.msra.mxu0 %v290
    %344 = vmatpush.msra.mxu0 %v289
    %345 = vmatpush.msra.mxu0 %v288
    %346 = vmatpush.msra.mxu0 %v287
    %347 = vmatpush.msra.mxu0 %v286
    %348 = vmatpush.msra.mxu0 %v285
    %349 = vmatpush.msra.mxu0 %v284
    %350 = vmatpush.msra.mxu0 %v283
    %351 = vmatpush.msra.mxu0 %v282
    %352 = vmatpush.msra.mxu0 %v281
    %353 = vmatpush.msra.mxu0 %v280
    %354 = vmatpush.msra.mxu0 %v279
    %355 = vmatpush.msra.mxu0 %v278
    %356 = vmatpush.msra.mxu0 %v277
    %357 = vmatpush.msra.mxu0 %v276
    %358 = vmatpush.msra.mxu0 %v275
    %359 = vmatmul.f32.gmra.mxu0 %v271
    %v360 = vpop.f32.mrf.mxu0
    %v361 = vadd.f32 %v341, %v360
    %362 = vdwg.mxu0
    %363 = vmatpush.msra.mxu0 %v306
    %364 = vmatpush.msra.mxu0 %v305
    %365 = vmatpush.msra.mxu0 %v304
    %366 = vmatpush.msra.mxu0 %v303
    %367 = vmatpush.msra.mxu0 %v302
    %368 = vmatpush.msra.mxu0 %v301
    %369 = vmatpush.msra.mxu0 %v300
    %370 = vmatpush.msra.mxu0 %v299
    %371 = vmatpush.msra.mxu0 %v298
    %372 = vmatpush.msra.mxu0 %v297
    %373 = vmatpush.msra.mxu0 %v296
    %374 = vmatpush.msra.mxu0 %v295
    %375 = vmatpush.msra.mxu0 %v294
    %376 = vmatpush.msra.mxu0 %v293
    %377 = vmatpush.msra.mxu0 %v292
    %378 = vmatpush.msra.mxu0 %v291
    %379 = vmatmul.f32.gmra.mxu0 %v272
    %v380 = vpop.f32.mrf.mxu0
    %v381 = vadd.f32 %v361, %v380
    %382 = vdwg.mxu0
    %383 = vmatpush.msra.mxu0 %v322
    %384 = vmatpush.msra.mxu0 %v321
    %385 = vmatpush.msra.mxu0 %v320
    %386 = vmatpush.msra.mxu0 %v319
    %387 = vmatpush.msra.mxu0 %v318
    %388 = vmatpush.msra.mxu0 %v317
    %389 = vmatpush.msra.mxu0 %v316
    %390 = vmatpush.msra.mxu0 %v315
    %391 = vmatpush.msra.mxu0 %v314
    %392 = vmatpush.msra.mxu0 %v313
    %393 = vmatpush.msra.mxu0 %v312
    %394 = vmatpush.msra.mxu0 %v311
    %395 = vmatpush.msra.mxu0 %v310
    %396 = vmatpush.msra.mxu0 %v309
    %397 = vmatpush.msra.mxu0 %v308
    %398 = vmatpush.msra.mxu0 %v307
    %399 = vmatmul.f32.gmra.mxu0 %v273
    %v400 = vpop.f32.mrf.mxu0
    %v401 = vadd.f32 %v381, %v400
    %402 = vdwg.mxu0
    %403 = vmatpush.msra.mxu0 %v338
    %404 = vmatpush.msra.mxu0 %v337
    %405 = vmatpush.msra.mxu0 %v336
    %406 = vmatpush.msra.mxu0 %v335
    %407 = vmatpush.msra.mxu0 %v334
    %408 = vmatpush.msra.mxu0 %v333
    %409 = vmatpush.msra.mxu0 %v332
    %410 = vmatpush.msra.mxu0 %v331
    %411 = vmatpush.msra.mxu0 %v330
    %412 = vmatpush.msra.mxu0 %v329
    %413 = vmatpush.msra.mxu0 %v328
    %414 = vmatpush.msra.mxu0 %v327
    %415 = vmatpush.msra.mxu0 %v326
    %416 = vmatpush.msra.mxu0 %v325
    %417 = vmatpush.msra.mxu0 %v324
    %418 = vmatpush.msra.mxu0 %v323
    %419 = vmatmul.f32.gmra.mxu0 %v274
    %v420 = vpop.f32.mrf.mxu0
    %v421 = vadd.f32 %v401, %v420
    %422 = vdwg.mxu0
    %v423 = vmul.f32 %v421, 0.01
    %v424 = vmax.f32 %v421, %v423
    %v425 = vld [vmem:[%s7] sm:$0xff]
    %v426 = vld [vmem:[%s7 + $0x8] sm:$0xff]
    %v427 = vld [vmem:[%s7 + $0x10] sm:$0xff]
    %v428 = vld [vmem:[%s7 + $0x18] sm:$0xff]
    %v429 = vld [vmem:[%s7 + $0x20] sm:$0xff]
    %v430 = vld [vmem:[%s7 + $0x28] sm:$0xff]
    %v431 = vld [vmem:[%s7 + $0x30] sm:$0xff]
    %v432 = vld [vmem:[%s7 + $0x38] sm:$0xff]
    %v433 = vld [vmem:[%s7 + $0x40] sm:$0xff]
    %v434 = vld [vmem:[%s7 + $0x48] sm:$0xff]
    %v435 = vld [vmem:[%s7 + $0x50] sm:$0xff]
    %v436 = vld [vmem:[%s7 + $0x58] sm:$0xff]
    %v437 = vld [vmem:[%s7 + $0x60] sm:$0xff]
    %v438 = vld [vmem:[%s7 + $0x68] sm:$0xff]
    %v439 = vld [vmem:[%s7 + $0x70] sm:$0xff]
    %v440 = vld [vmem:[%s7 + $0x78] sm:$0xff]
    %v441 = vld [vmem:[%s8] sm:$0x1]
    %v443 = vperm.slane %v441, 0
    %445 = vmatpush.msra.mxu0 %v440
    %446 = vmatpush.msra.mxu0 %v439
    %447 = vmatpush.msra.mxu0 %v438
    %448 = vmatpush.msra.mxu0 %v437
    %449 = vmatpush.msra.mxu0 %v436
    %450 = vmatpush.msra.mxu0 %v435
    %451 = vmatpush.msra.mxu0 %v434
    %452 = vmatpush.msra.mxu0 %v433
    %453 = vmatpush.msra.mxu0 %v432
    %454 = vmatpush.msra.mxu0 %v431
    %455 = vmatpush.msra.mxu0 %v430
    %456 = vmatpush.msra.mxu0 %v429
    %457 = vmatpush.msra.mxu0 %v428
    %458 = vmatpush.msra.mxu0 %v427
    %459 = vmatpush.msra.mxu0 %v426
    %460 = vmatpush.msra.mxu0 %v425
    %461 = vmatmul.f32.gmra.mxu0 %v424
    %v462 = vpop.f32.mrf.mxu0
    %v463 = vadd.f32 %v443, %v462
    %464 = vdwg.mxu0
    %v465 = vmul.f32 %v463, 0.01
    %v466 = vmax.f32 %v463, %v465
    %v467 = vld [vmem:[%s9] sm:$0x1]
    %v469 = vperm.slane %v467, 0
    %v471 = vmul.f32 %v466, %v469
    %vm472 = vcmask 261120
    %v473 = vsel %vm472, %v471, 0.0
    %474 = vadd.xlane.f32.xlu0 %v473
    %v475 = vpop.xlane.xlu0 %474
    %s476 = sld [smem:[#allocation2]]
    %v477 = vstv %s476
    %v478 = vadd.f32 %v475, %v477
    %vm479 = vcmask 7168
    %480 = vst.msk [vmem:[%s11] sm:$0xff] %vm479, %v478
    // Predicated region
    $region50: #{tpu_custom_call.1} parent=1 // pred_check
      _
    $region51: #{tpu_custom_call.1} parent=1 // pred_check_branch
      %482 = sbr.rel (0) target = $region53
    $region52: #{tpu_custom_call.1} parent=1 // pred_region
      _
    $region53: #{tpu_custom_call.1} parent=1 // pred_fallthru
      _
    // Predicated region
    $region54: #{tpu_custom_call.1} parent=1 // pred_check
      _
    $region55: #{tpu_custom_call.1} parent=1 // pred_check_branch
      %484 = sbr.rel (0) target = $region57
    $region56: #{tpu_custom_call.1} parent=1 // pred_region
      _
    $region57: #{tpu_custom_call.1} parent=1 // pred_fallthru
      _
    %485 = vsyncpa [#allocation4], 1

</llo_original>
